<compile_context>
chip_gen: v7x
topology: tpu7x:2x2x1
jax: 0.10.0
libtpu: 0.0.40
codegen_flags: <defaults>
</compile_context>

<pallas_src>
import functools
import math

import jax
import jax.numpy as jnp
from jax.experimental import pallas as pl
from jax.experimental.pallas import tpu as pltpu


# ---------------------------------------------------------------------------
# Kernels
# ---------------------------------------------------------------------------
def _fused_kernel(x_ref, w_ref, b_ref, o_ref, *, block_n):
    """Single-K-step kernel: grid = (M blocks, N blocks). No accumulator."""
    j = pl.program_id(1)
    y = jnp.dot(x_ref[...], w_ref[...], preferred_element_type=jnp.float32)
    off = pl.multiple_of(j * block_n, 128)
    y = y + b_ref[:, pl.ds(off, block_n)].astype(jnp.float32)   # (1, tn) broadcasts
    # Exact GELU (erf form) — matches torch.nn.GELU() default.
    y = 0.5 * y * (1.0 + jax.lax.erf(y * (1.0 / math.sqrt(2.0))))
    o_ref[...] = y.astype(o_ref.dtype)


def _accum_kernel(x_ref, w_ref, b_ref, o_ref, acc_ref, *, block_n):
    """Fallback for very large H: grid = (M, N, K) with f32 VMEM accumulator."""
    k = pl.program_id(2)

    @pl.when(k == 0)
    def _():
        acc_ref[...] = jnp.zeros_like(acc_ref)

    acc_ref[...] += jnp.dot(
        x_ref[...], w_ref[...], preferred_element_type=jnp.float32)

    @pl.when(k == pl.num_programs(2) - 1)
    def _():
        j = pl.program_id(1)
        off = pl.multiple_of(j * block_n, 128)
        y = acc_ref[...] + b_ref[:, pl.ds(off, block_n)].astype(jnp.float32)
        y = 0.5 * y * (1.0 + jax.lax.erf(y * (1.0 / math.sqrt(2.0))))
        o_ref[...] = y.astype(o_ref.dtype)


# ---------------------------------------------------------------------------
# Wrapper
# ---------------------------------------------------------------------------
def _round_up(x, m):
    return (x + m - 1) // m * m


def _pick_divisor_tile(total, max_tile, align):
    """Largest multiple of `align` that divides `total` and is <= max_tile."""
    best = align
    t = align
    limit = min(max_tile, total)
    while t <= limit:
        if total % t == 0:
            best = t
        t += align
    return best


def ernie_layout_intermediate(hidden_states, weight, bias,
                              *, tm=512, tn=512, max_tk=2048):
    """Pallas implementation of ErnieLayoutIntermediate.forward.

    hidden_states: (..., H) float
    weight:        (H, I)   float   (nn.Linear weight, transposed)
    bias:          (I,)     float
    returns:       (..., I) same dtype as hidden_states
    """
    orig_shape = hidden_states.shape
    H = int(orig_shape[-1])
    I = int(weight.shape[1])
    M = 1
    for d in orig_shape[:-1]:
        M *= int(d)

    x = hidden_states.reshape(M, H)
    in_itemsize = jnp.dtype(x.dtype).itemsize
    out_itemsize = in_itemsize

    # Sublane packing: f32 -> 8 rows, bf16 -> 16, int8/fp8 -> 32.
    sub = max(8, 32 // max(in_itemsize, 1))

    # ---- M tiling (tokens can be anything; pad only up to the chosen tile).
    tm = max(sub, min(tm, _round_up(M, sub)))
    tm = _round_up(tm, sub)
    Mp = _round_up(M, tm)

    # ---- N tiling: choose a tile that divides the 128-aligned I exactly.
    Np = _round_up(I, 128)
    tn = _pick_divisor_tile(Np, tn, 128)

    # ---- K tiling: use the full (128-aligned) hidden size when it fits,
    #      collapsing the K grid axis; otherwise pick an exact divisor.
    Kp = _round_up(H, 128)
    if Kp <= max_tk:
        tk = Kp
    else:
        tk = _pick_divisor_tile(Kp, max_tk, 128)
    k_steps = Kp // tk
    single_k = (k_steps == 1)

    # Keep both v7x TensorCores busy: if the parallel grid collapsed to one
    # block, split N (only when the halves stay 128-aligned and >= 256).
    if (Mp // tm) * (Np // tn) == 1 and tn >= 512 and (tn // 2) % 128 == 0:
        tn //= 2

    grid_m = Mp // tm
    grid_n = Np // tn

    # ---- Padding (skipped entirely for the typical aligned ErnieLayout dims).
    if (Mp, Kp) != (M, H):
        x = jnp.pad(x, ((0, Mp - M), (0, Kp - H)))
    w = weight
    if (Kp, Np) != (H, I):
        w = jnp.pad(w, ((0, Kp - H), (0, Np - I)))
    b2d = bias.reshape(1, I)
    if Np != I:
        b2d = jnp.pad(b2d, ((0, 0), (0, Np - I)))

    # ---- VMEM budget: double-buffered input/weight/output tiles + bias
    #      (+ accumulator on the multi-K path).  Cap at 64 MiB so the same
    #      config is safe on v7x (64 MiB physical) and v5e/v6e.
    step_bytes = (tm * tk + tk * tn) * in_itemsize + tm * tn * out_itemsize
    vmem_bytes = 2 * step_bytes + Np * jnp.dtype(b2d.dtype).itemsize
    if not single_k:
        vmem_bytes += tm * tn * 4
    vmem_limit = min(64 * 1024 * 1024,
                     max(32 * 1024 * 1024, int(vmem_bytes * 1.25) + (1 << 20)))

    cost = pl.CostEstimate(
        flops=2 * M * H * I,
        transcendentals=M * I,
        bytes_accessed=(M * H + H * I + I) * in_itemsize + M * I * out_itemsize)

    bias_spec = pl.BlockSpec((1, Np), (lambda i, j: (0, 0)) if single_k
                             else (lambda i, j, k: (0, 0)))

    if single_k:
        grid_spec = pltpu.PrefetchScalarGridSpec(
            num_scalar_prefetch=0,
            grid=(grid_m, grid_n),
            in_specs=[
                pl.BlockSpec((tm, tk), lambda i, j: (i, 0)),   # x tile
                pl.BlockSpec((tk, tn), lambda i, j: (0, j)),   # w tile
                bias_spec,                                     # full-width bias
            ],
            out_specs=pl.BlockSpec((tm, tn), lambda i, j: (i, j)),
        )
        kernel = functools.partial(_fused_kernel, block_n=tn)
        semantics = ("parallel", "parallel")
    else:
        grid_spec = pltpu.PrefetchScalarGridSpec(
            num_scalar_prefetch=0,
            grid=(grid_m, grid_n, k_steps),
            in_specs=[
                pl.BlockSpec((tm, tk), lambda i, j, k: (i, k)),
                pl.BlockSpec((tk, tn), lambda i, j, k: (k, j)),
                bias_spec,
            ],
            out_specs=pl.BlockSpec((tm, tn), lambda i, j, k: (i, j)),
            scratch_shapes=[pltpu.VMEM((tm, tn), jnp.float32)],
        )
        kernel = functools.partial(_accum_kernel, block_n=tn)
        semantics = ("parallel", "parallel", "arbitrary")

    out = pl.pallas_call(
        kernel,
        out_shape=jax.ShapeDtypeStruct((Mp, Np), hidden_states.dtype),
        grid_spec=grid_spec,
        compiler_params=pltpu.CompilerParams(
            dimension_semantics=semantics,
            vmem_limit_bytes=vmem_limit),
        cost_estimate=cost,
    )(x, w, b2d)

    return out[:M, :I].reshape(*orig_shape[:-1], I)


# ---------------------------------------------------------------------------
# Reference + smoke test
# ---------------------------------------------------------------------------
def _reference(hidden_states, weight, bias):
    y = jnp.dot(hidden_states, weight, preferred_element_type=jnp.float32) + bias
    y = 0.5 * y * (1.0 + jax.lax.erf(y * (1.0 / math.sqrt(2.0))))
    return y.astype(hidden_states.dtype)


if __name__ == "__main__":
    # Small shapes consistent with the module: batch=2, seq=8,
    # hidden_size=128, intermediate_size=512 (the usual 4x expansion).
    B, S, H, I = 2, 8, 128, 512

    key = jax.random.PRNGKey(0)
    kx, kw, kb = jax.random.split(key, 3)

    hidden_states = jax.random.normal(kx, (B, S, H), dtype=jnp.float32)
    weight = 0.02 * jax.random.normal(kw, (H, I), dtype=jnp.float32)
    bias = 0.02 * jax.random.normal(kb, (I,), dtype=jnp.float32)

    out = ernie_layout_intermediate(hidden_states, weight, bias)
    out = jax.block_until_ready(out)

    ref = _reference(hidden_states, weight, bias)
    assert out.shape == (B, S, I), f"bad shape {out.shape}"
    assert jnp.allclose(out, ref, atol=1e-3, rtol=1e-3), "mismatch vs reference"

    print("KERNEL_OK")
</pallas_src>

<mosaic_0001>
module attributes {stable_mosaic.version = 11 : i64} {
  func.func @_fused_kernel(%arg0: i32, %arg1: i32, %arg2: memref<16x128xf32, #tpu.memory_space<vmem>>, %arg3: memref<128x256xf32, #tpu.memory_space<vmem>>, %arg4: memref<1x512xf32, #tpu.memory_space<vmem>>, %arg5: memref<16x256xf32, #tpu.memory_space<vmem>>) attributes {dimension_semantics = [#tpu.dimension_semantics<parallel>, #tpu.dimension_semantics<parallel>], iteration_bounds = array<i64: 1, 2>, scalar_prefetch = 0 : i64, scratch_operands = 0 : i64, tpu.core_type = #tpu.core_type<tc>, window_params = [{transform_indices = @transform_0, window_bounds = array<i64: 16, 128>}, {transform_indices = @transform_1, window_bounds = array<i64: 128, 256>}, {pipeline_mode = #tpu.pipeline_mode<synchronous>, transform_indices = @transform_2, window_bounds = array<i64: 1, 512>}, {transform_indices = @transform_3, window_bounds = array<i64: 16, 256>}]} {
    %c0 = arith.constant 0 : index
    %c0_0 = arith.constant 0 : index
    %0 = vector.load %arg2[%c0, %c0_0] : memref<16x128xf32, #tpu.memory_space<vmem>>, vector<16x128xf32>
    %c0_1 = arith.constant 0 : index
    %c0_2 = arith.constant 0 : index
    %1 = vector.load %arg3[%c0_1, %c0_2] : memref<128x256xf32, #tpu.memory_space<vmem>>, vector<128x256xf32>
    %cst = arith.constant dense<0.000000e+00> : vector<16x256xf32>
    %2 = tpu.matmul %0, %1, %cst {dimension_numbers = #tpu.dot_dimension_numbers<[1], [0], [0], [1], [0, 0, 1, 1], [], []>} : vector<16x128xf32>, vector<128x256xf32>, vector<16x256xf32> -> vector<16x256xf32>
    %c256_i32 = arith.constant 256 : i32
    %3 = arith.muli %arg1, %c256_i32 : i32
    %4 = tpu.assume_multiple %3, 128 : i32
    %c0_3 = arith.constant 0 : index
    %5 = arith.index_cast %4 : i32 to index
    %6 = vector.load %arg4[%c0_3, %5] : memref<1x512xf32, #tpu.memory_space<vmem>>, vector<1x256xf32>
    %7 = vector.broadcast %6 : vector<1x256xf32> to vector<16x256xf32>
    %8 = arith.addf %2, %7 : vector<16x256xf32>
    %cst_4 = arith.constant 5.000000e-01 : f32
    %9 = vector.broadcast %cst_4 : f32 to vector<16x256xf32>
    %10 = arith.mulf %9, %8 : vector<16x256xf32>
    %cst_5 = arith.constant 0.707106769 : f32
    %11 = vector.broadcast %cst_5 : f32 to vector<16x256xf32>
    %12 = arith.mulf %8, %11 : vector<16x256xf32>
    %13 = math.erf %12 : vector<16x256xf32>
    %cst_6 = arith.constant 1.000000e+00 : f32
    %14 = vector.broadcast %cst_6 : f32 to vector<16x256xf32>
    %15 = arith.addf %14, %13 : vector<16x256xf32>
    %16 = arith.mulf %10, %15 : vector<16x256xf32>
    %c0_7 = arith.constant 0 : index
    %c0_8 = arith.constant 0 : index
    %17 = vector.load %arg5[%c0_7, %c0_8] : memref<16x256xf32, #tpu.memory_space<vmem>>, vector<16x256xf32>
    tpu.vector_store %arg5[%c0_7, %c0_8], %16 {strides = array<i32>} : memref<16x256xf32, #tpu.memory_space<vmem>>, vector<16x256xf32>,
    return
  }
  func.func @transform_0(%arg0: i32, %arg1: i32) -> (i32, i32) {
    %c0_i32 = arith.constant 0 : i32
    %c0_i32_0 = arith.constant 0 : i32
    return %arg0, %c0_i32 : i32, i32
  }
  func.func @transform_1(%arg0: i32, %arg1: i32) -> (i32, i32) {
    %c0_i32 = arith.constant 0 : i32
    %c0_i32_0 = arith.constant 0 : i32
    return %c0_i32, %arg1 : i32, i32
  }
  func.func @transform_2(%arg0: i32, %arg1: i32) -> (i32, i32) {
    %c0_i32 = arith.constant 0 : i32
    %c0_i32_0 = arith.constant 0 : i32
    %c0_i32_1 = arith.constant 0 : i32
    return %c0_i32, %c0_i32_0 : i32, i32
  }
  func.func @transform_3(%arg0: i32, %arg1: i32) -> (i32, i32) {
    %c0_i32 = arith.constant 0 : i32
    return %arg0, %arg1 : i32, i32
  }
}

</mosaic_0001>

<llo_original>
// kernel: tpu_custom_call.1
$region0: #{tpu_custom_call.1}
  #allocation0 [shape = 'u32[]', space=smem, size = 0x4, offset = 0x4, fixed_abs, tag = 'smem constant byte address 0x4 - core index']
  #allocation1 [shape = 'u32[144,128]{1,0:T(1,128)}', space=vmem, size = 0x12000, scoped, tag = 'internal scratch']
  %s0 = inlined_call_operand.hbm [shape: f32[16,128], index: 0, kind: input, shape index: {}]
  %s1 = inlined_call_operand.hbm [shape: f32[128,512], index: 1, kind: input, shape index: {}]
  %s2 = inlined_call_operand.vmem [shape: f32[1,512], index: 2, kind: input, shape index: {}]
  %s3 = inlined_call_operand.hbm [shape: f32[16,512], index: 3, kind: output, shape index: {}]
  %s4 = sld [smem:[#allocation0]]
  $region53: #{tpu_custom_call.1} parent=0
    _
  %s6 = ssub.s32 1, %s4
  %s7 = scalar_select 0, %s6, %s4
  $region1: #{tpu_custom_call.1} parent=0
    #allocation2 [shape = 'u8[8192]{0}', space=vmem, size = 0x2000, scoped, tag = 'input window, operand 0, single buffered']
    #allocation3 [shape = 's32[2]{0}', space=sflag, size = 0x8, scoped, tag = 'scoped memory for tpu_custom_call.1']
    #allocation4 [shape = 's32[2]{0}', space=sflag, size = 0x8, scoped, tag = 'scoped memory for tpu_custom_call.1']
    #allocation5 [shape = 'u8[262144]{0}', space=vmem, size = 0x40000, scoped, tag = 'input window, operand 1']
    #allocation6 [shape = 's32[2]{0}', space=sflag, size = 0x8, scoped, tag = 'scoped memory for tpu_custom_call.1']
    #allocation7 [shape = 'u8[32768]{0}', space=vmem, size = 0x8000, scoped, tag = 'output window, operand 0']
    %8 = vsyncpa [#allocation3], 0
    %9 = vsyncpa [#allocation6], 0
    %s10 = scalar_lea.sflag [#allocation6], 1
    %11 = vsyncpa %s10, 0
    %12 = vsyncpa [#allocation4], 0
    %s13 = scalar_lea.sflag [#allocation4], 1
    %14 = vsyncpa %s13, 0
    loop: start=0, step=1, limit=4
    $region2: #{tpu_custom_call.1} parent=1 // loop_pre_header
      _
    $region3: #{tpu_custom_call.1} parent=1 // loop_header
      %s16 = sphi 0, %s20
      %p17 = scmp.ge.s32.totalorder %s16, 4
      %s23 = sphi 0, %s35
      %s24 = sphi 0, %s31
      %s25 = sphi 0, %s23
      %s26 = sphi 0, %s24
      %s27 = sphi 0, %s25
      %s28 = sphi 0, %s26
      %s38 = sphi 0, %s40
      %s41 = sphi 0, %s38
      %s42 = sphi 0, %s41
      %s58 = sphi 0, %s42
      %s64 = sphi 0, %s66
      %s67 = sphi 0, %s64
      %s68 = sphi 0, %s67
      %s84 = sphi 0, %s68
      %s88 = sphi 0, %s88
      %s90 = sphi 0, %s88
      %s91 = sphi 0, %s90
      %s105 = sphi 0, %s91
      %s113 = sphi 0, %s115
      %s116 = sphi 0, %s113
      %s117 = sphi 0, %s116
      %s133 = sphi 0, %s117
    $region4: #{tpu_custom_call.1} parent=1 // loop_header_branch
      %19 = sbr.rel (%p17) target = $region8
    $region5: #{tpu_custom_call.1} parent=1 // loop_body
      %s21 = ssub.s32 %s16, 1
      %s22 = ssub.s32 %s16, 2
      %s29 = sadd.s32 1, %s24
      %p30 = scmp.ge.s32.totalorder %s29, 2
      %s31 = scalar_select %p30, 0, %s29
      %s32 = sadd.s32 1, %s23
      %s33 = scalar_select %p30, %s32, %s23
      %p34 = scmp.ge.s32.totalorder %s33, 1
      %s35 = scalar_select %p34, 0, %s33
      %s36 = ssub.s32 %s23, %s35
      %p37 = scmp.eq.s32.totalorder %s36, 0
      %s39 = sadd.s32 %s38, 1
      %s40 = scalar_select %p37, %s38, %s39
      %p43 = pneg %p37
      %p44 = scmp.eq.s32.totalorder %s16, 1
      %p45 = por %p43, %p44
      %p46 = scmp.ne.s32.totalorder %s38, %s41
      %p47 = scmp.eq.s32.totalorder %s16, 0
      %p48 = por %p46, %p47
      %p49 = scmp.ne.s32.totalorder %s38, %s41
      %p50 = scmp.eq.s32.totalorder %s21, 1
      %p51 = por %p49, %p50
      %p52 = scmp.ne.s32.totalorder %s41, %s42
      %p53 = scmp.eq.s32.totalorder %s21, 0
      %p54 = por %p52, %p53
      %p55 = scmp.ne.s32.totalorder %s41, %s42
      %p56 = scmp.eq.s32.totalorder %s22, 1
      %p57 = por %p55, %p56
      %p59 = scmp.ne.s32.totalorder %s42, %s58
      %p60 = scmp.eq.s32.totalorder %s22, 0
      %p61 = por %p59, %p60
      %s62 = ssub.s32 %s24, %s31
      %p63 = scmp.eq.s32.totalorder %s62, 0
      %s65 = sadd.s32 %s64, 1
      %s66 = scalar_select %p63, %s64, %s65
      %p69 = pneg %p63
      %p70 = scmp.eq.s32.totalorder %s16, 1
      %p71 = por %p69, %p70
      %p72 = scmp.ne.s32.totalorder %s64, %s67
      %p73 = scmp.eq.s32.totalorder %s16, 0
      %p74 = por %p72, %p73
      %p75 = scmp.ne.s32.totalorder %s64, %s67
      %p76 = scmp.eq.s32.totalorder %s21, 1
      %p77 = por %p75, %p76
      %p78 = scmp.ne.s32.totalorder %s67, %s68
      %p79 = scmp.eq.s32.totalorder %s21, 0
      %p80 = por %p78, %p79
      %p81 = scmp.ne.s32.totalorder %s67, %s68
      %p82 = scmp.eq.s32.totalorder %s22, 1
      %p83 = por %p81, %p82
      %p85 = scmp.ne.s32.totalorder %s68, %s84
      %p86 = scmp.eq.s32.totalorder %s22, 0
      %p87 = por %p85, %p86
      %s89 = sadd.s32 %s88, 1
      %p92 = scmp.eq.s32.totalorder %s16, 1
      %p93 = scmp.ne.s32.totalorder %s88, %s90
      %p94 = scmp.eq.s32.totalorder %s16, 0
      %p95 = por %p93, %p94
      %p96 = scmp.ne.s32.totalorder %s88, %s90
      %p97 = scmp.eq.s32.totalorder %s21, 1
      %p98 = por %p96, %p97
      %p99 = scmp.ne.s32.totalorder %s90, %s91
      %p100 = scmp.eq.s32.totalorder %s21, 0
      %p101 = por %p99, %p100
      %p102 = scmp.ne.s32.totalorder %s90, %s91
      %p103 = scmp.eq.s32.totalorder %s22, 1
      %p104 = por %p102, %p103
      %p106 = scmp.ne.s32.totalorder %s91, %s105
      %p107 = scmp.eq.s32.totalorder %s22, 0
      %p108 = por %p106, %p107
      %s109 = ssub.s32 %s23, %s35
      %s110 = ssub.s32 %s24, %s31
      %s111 = sor.u32 %s109, %s110
      %p112 = scmp.eq.s32.totalorder %s111, 0
      %s114 = sadd.s32 %s113, 1
      %s115 = scalar_select %p112, %s113, %s114
      %p118 = pneg %p112
      %p119 = scmp.eq.s32.totalorder %s16, 1
      %p120 = por %p118, %p119
      %p121 = scmp.ne.s32.totalorder %s113, %s116
      %p122 = scmp.eq.s32.totalorder %s16, 0
      %p123 = por %p121, %p122
      %p124 = scmp.ne.s32.totalorder %s113, %s116
      %p125 = scmp.eq.s32.totalorder %s21, 1
      %p126 = por %p124, %p125
      %p127 = scmp.ne.s32.totalorder %s116, %s117
      %p128 = scmp.eq.s32.totalorder %s21, 0
      %p129 = por %p127, %p128
      %p130 = scmp.ne.s32.totalorder %s116, %s117
      %p131 = scmp.eq.s32.totalorder %s22, 1
      %p132 = por %p130, %p131
      %p134 = scmp.ne.s32.totalorder %s117, %s133
      %p135 = scmp.eq.s32.totalorder %s22, 0
      %p136 = por %p134, %p135
      %p137 = scmp.le.s32.totalorder 1, %s16
      %p138 = scmp.lt.s32.totalorder %s16, 3
      %p139 = pnand %p137, %p138
      %p140 = pneg %p139
      // Predicated region
      $region9: #{tpu_custom_call.1} parent=5 // pred_check
        _
      $region10: #{tpu_custom_call.1} parent=5 // pred_check_branch
        %142 = sbr.rel (%p139) target = $region12
      $region11: #{tpu_custom_call.1} parent=5 // pred_region
        %s143 = ssub.s32 %s16, 1
        // Predicated region
        $region13: #{tpu_custom_call.1} parent=11 // pred_check
          %p144 = pneg %p54
        $region14: #{tpu_custom_call.1} parent=11 // pred_check_branch
          %146 = sbr.rel (%p144) target = $region16
        $region15: #{tpu_custom_call.1} parent=11 // pred_region
          %s147 = smul.u32 2, %s25
          %s149 = ssub.s32 256, 256
          %150 = vsyncadd [#allocation3], %s149
          %s151 = smul.addr %s147, 128
          %s152 = scalar_lea.hbm %s0, %s151
          %s153 = sshll.u32 [#allocation2], 4
          %s154 = int_to_ptr.vmem [resolvable:$true] %s153
          %159 = dma.hbm_to_vmem [thread:$0]  %s152, 256, %s154, [#allocation3], 128, 128, 8
        $region16: #{tpu_custom_call.1} parent=11 // pred_fallthru
          _
        // Predicated region
        $region17: #{tpu_custom_call.1} parent=11 // pred_check
          %p160 = pneg %p101
        $region18: #{tpu_custom_call.1} parent=11 // pred_check_branch
          %162 = sbr.rel (%p160) target = $region20
        $region19: #{tpu_custom_call.1} parent=11 // pred_region
          _
        $region20: #{tpu_custom_call.1} parent=11 // pred_fallthru
          _
      $region12: #{tpu_custom_call.1} parent=5 // pred_fallthru
        _
      %p163 = scmp.lt.s32.totalorder %s16, 2
      // Predicated region
      $region21: #{tpu_custom_call.1} parent=5 // pred_check
        %p164 = pneg %p163
      $region22: #{tpu_custom_call.1} parent=5 // pred_check_branch
        %166 = sbr.rel (%p164) target = $region24
      $region23: #{tpu_custom_call.1} parent=5 // pred_region
        // Predicated region
        $region25: #{tpu_custom_call.1} parent=23 // pred_check
          %p167 = pneg %p74
        $region26: #{tpu_custom_call.1} parent=23 // pred_check_branch
          %169 = sbr.rel (%p167) target = $region28
        $region27: #{tpu_custom_call.1} parent=23 // pred_region
          %s170 = sand.u32 %s64, 1
          %s171 = scalar_lea.sflag [#allocation6], %s170
          %s172 = sand.u32 %s64, 1
          %s173 = smul.addr %s172, 256
          %s174 = scalar_lea.vmem [#allocation5], %s173
          %s175 = smul.u32 2, %s24
          %s177 = ssub.s32 4096, 4096
          %178 = vsyncadd %s171, %s177
          %s179 = smul.addr %s175, 128
          %s180 = scalar_lea.hbm %s1, %s179
          %s181 = sshll.u32 %s174, 4
          %s182 = int_to_ptr.vmem [resolvable:$true] %s181
          %187 = dma.hbm_to_vmem [thread:$0]  %s180, 4096, %s182, %s171, 512, 256, 16
        $region28: #{tpu_custom_call.1} parent=23 // pred_fallthru
          _
      $region24: #{tpu_custom_call.1} parent=5 // pred_fallthru
        _
      %p188 = scmp.le.s32.totalorder 1, %s16
      %p189 = scmp.lt.s32.totalorder %s16, 3
      %p190 = pnand %p188, %p189
      %p191 = pneg %p190
      // Predicated region
      $region29: #{tpu_custom_call.1} parent=5 // pred_check
        _
      $region30: #{tpu_custom_call.1} parent=5 // pred_check_branch
        %193 = sbr.rel (%p190) target = $region32
      $region31: #{tpu_custom_call.1} parent=5 // pred_region
        %s194 = ssub.s32 %s16, 1
        // Predicated region
        $region33: #{tpu_custom_call.1} parent=31 // pred_check
          %p195 = pneg %p54
        $region34: #{tpu_custom_call.1} parent=31 // pred_check_branch
          %197 = sbr.rel (%p195) target = $region36
        $region35: #{tpu_custom_call.1} parent=31 // pred_region
          %198 = dma.done [#allocation3], 256
        $region36: #{tpu_custom_call.1} parent=31 // pred_fallthru
          _
        %s199 = sand.u32 %s67, 1
        %s200 = scalar_lea.sflag [#allocation6], %s199
        %s201 = sand.u32 %s67, 1
        %s202 = smul.addr %s201, 256
        %s203 = scalar_lea.vmem [#allocation5], %s202
        // Predicated region
        $region37: #{tpu_custom_call.1} parent=31 // pred_check
          %p204 = pneg %p80
        $region38: #{tpu_custom_call.1} parent=31 // pred_check_branch
          %206 = sbr.rel (%p204) target = $region40
        $region39: #{tpu_custom_call.1} parent=31 // pred_region
          %207 = dma.done %s200, 4096
        $region40: #{tpu_custom_call.1} parent=31 // pred_fallthru
          _
        %p208 = pneg %p54
        %p209 = pneg %p51
        %s210 = sand.u32 %s67, 1
        %s211 = scalar_lea.sflag [#allocation6], %s210
        %s212 = sand.u32 %s67, 1
        %s213 = smul.addr %s212, 256
        %s214 = scalar_lea.vmem [#allocation5], %s213
        %p215 = pneg %p80
        %p216 = pneg %p77
        %p217 = pneg %p101
        %p218 = pneg %p98
        %p219 = pneg %p129
        %p220 = pneg %p126
        %s221 = sand.u32 %s116, 1
        %s222 = scalar_lea.sflag [#allocation4], %s221
        %s223 = sand.u32 %s116, 1
        %s224 = smul.addr %s223, 32
        %s225 = scalar_lea.vmem [#allocation7], %s224
        %s226 = smul.u32 2, %s25
        %s227 = smul.u32 2, %s26
        %s228 = smul.u32 2, %s25
        %s229 = smul.u32 2, %s26
        %v230 = vld [vmem:[#allocation2] sm:$0xff]
        %v231 = vld [vmem:[#allocation2 + $0x8] sm:$0xff]
        %v232 = vld [vmem:[%s203] sm:$0xff]
        %v233 = vld [vmem:[%s203 + $0x8] sm:$0xff]
        %v234 = vld [vmem:[%s203 + $0x10] sm:$0xff]
        %v235 = vld [vmem:[%s203 + $0x18] sm:$0xff]
        %v236 = vld [vmem:[%s203 + $0x20] sm:$0xff]
        %v237 = vld [vmem:[%s203 + $0x28] sm:$0xff]
        %v238 = vld [vmem:[%s203 + $0x30] sm:$0xff]
        %v239 = vld [vmem:[%s203 + $0x38] sm:$0xff]
        %v240 = vld [vmem:[%s203 + $0x40] sm:$0xff]
        %v241 = vld [vmem:[%s203 + $0x48] sm:$0xff]
        %v242 = vld [vmem:[%s203 + $0x50] sm:$0xff]
        %v243 = vld [vmem:[%s203 + $0x58] sm:$0xff]
        %v244 = vld [vmem:[%s203 + $0x60] sm:$0xff]
        %v245 = vld [vmem:[%s203 + $0x68] sm:$0xff]
        %v246 = vld [vmem:[%s203 + $0x70] sm:$0xff]
        %v247 = vld [vmem:[%s203 + $0x78] sm:$0xff]
        %v248 = vld [vmem:[%s203 + $0x80] sm:$0xff]
        %v249 = vld [vmem:[%s203 + $0x88] sm:$0xff]
        %v250 = vld [vmem:[%s203 + $0x90] sm:$0xff]
        %v251 = vld [vmem:[%s203 + $0x98] sm:$0xff]
        %v252 = vld [vmem:[%s203 + $0xa0] sm:$0xff]
        %v253 = vld [vmem:[%s203 + $0xa8] sm:$0xff]
        %v254 = vld [vmem:[%s203 + $0xb0] sm:$0xff]
        %v255 = vld [vmem:[%s203 + $0xb8] sm:$0xff]
        %v256 = vld [vmem:[%s203 + $0xc0] sm:$0xff]
        %v257 = vld [vmem:[%s203 + $0xc8] sm:$0xff]
        %v258 = vld [vmem:[%s203 + $0xd0] sm:$0xff]
        %v259 = vld [vmem:[%s203 + $0xd8] sm:$0xff]
        %v260 = vld [vmem:[%s203 + $0xe0] sm:$0xff]
        %v261 = vld [vmem:[%s203 + $0xe8] sm:$0xff]
        %v262 = vld [vmem:[%s203 + $0xf0] sm:$0xff]
        %v263 = vld [vmem:[%s203 + $0xf8] sm:$0xff]
        %s264 = smul.u32 %s26, 256
        %s265 = sshra.s32 %s264, 7
        %s266 = sand.u32 %s264, 127
        %s267 = scalar_lea.vmem %s2, %s265
        %v268 = vld [vmem:[%s267] sm:$0x3]
        %v270 = vlaneseq
        %v271 = vshrl.u32 %v270, 7
        %v272 = vsub.s32 0, %v271
        %v273 = vrot.slane %v268, %v272
        %v274 = vlaneseq
        %v275 = vshrl.u32 %v274, 7
        %v276 = vsub.s32 1, %v275
        %v277 = vrot.slane %v268, %v276
        %280 = vmatprep.subr.mxu0 %v233
        %281 = vmatpush1.msra.mxu0 %v232
        %282 = vmatprep.subr.mxu0 %v235
        %283 = vmatpush1.msra.mxu0 %v234
        %284 = vmatprep.subr.mxu0 %v237
        %285 = vmatpush1.msra.mxu0 %v236
        %286 = vmatprep.subr.mxu0 %v239
        %287 = vmatpush1.msra.mxu0 %v238
        %288 = vmatprep.subr.mxu0 %v241
        %289 = vmatpush1.msra.mxu0 %v240
        %290 = vmatprep.subr.mxu0 %v243
        %291 = vmatpush1.msra.mxu0 %v242
        %292 = vmatprep.subr.mxu0 %v245
        %293 = vmatpush1.msra.mxu0 %v244
        %294 = vmatprep.subr.mxu0 %v247
        %295 = vmatpush1.msra.mxu0 %v246
        %296 = vmatprep.subr.mxu0 %v249
        %297 = vmatpush1.msra.mxu0 %v248
        %298 = vmatprep.subr.mxu0 %v251
        %299 = vmatpush1.msra.mxu0 %v250
        %300 = vmatprep.subr.mxu0 %v253
        %301 = vmatpush1.msra.mxu0 %v252
        %302 = vmatprep.subr.mxu0 %v255
        %303 = vmatpush1.msra.mxu0 %v254
        %304 = vmatprep.subr.mxu0 %v257
        %305 = vmatpush1.msra.mxu0 %v256
        %306 = vmatprep.subr.mxu0 %v259
        %307 = vmatpush1.msra.mxu0 %v258
        %308 = vmatprep.subr.mxu0 %v261
        %309 = vmatpush1.msra.mxu0 %v260
        %310 = vmatprep.subr.mxu0 %v263
        %311 = vmatpush1.msra.mxu0 %v262
        %312 = vmatprep.subr.mxu0 0.0
        %313 = vmatpush1.msra.mxu0 0.0
        %314 = vmatprep.subr.mxu0 0.0
        %315 = vmatpush1.msra.mxu0 0.0
        %316 = vmatprep.subr.mxu0 0.0
        %317 = vmatpush1.msra.mxu0 0.0
        %318 = vmatprep.subr.mxu0 0.0
        %319 = vmatpush1.msra.mxu0 0.0
        %320 = vmatprep.subr.mxu0 0.0
        %321 = vmatpush1.msra.mxu0 0.0
        %322 = vmatprep.subr.mxu0 0.0
        %323 = vmatpush1.msra.mxu0 0.0
        %324 = vmatprep.subr.mxu0 0.0
        %325 = vmatpush1.msra.mxu0 0.0
        %326 = vmatprep.subr.mxu0 0.0
        %327 = vmatpush1.msra.mxu0 0.0
        %328 = vmatprep.subr.mxu0 0.0
        %329 = vmatpush1.msra.mxu0 0.0
        %330 = vmatprep.subr.mxu0 0.0
        %331 = vmatpush1.msra.mxu0 0.0
        %332 = vmatprep.subr.mxu0 0.0
        %333 = vmatpush1.msra.mxu0 0.0
        %334 = vmatprep.subr.mxu0 0.0
        %335 = vmatpush1.msra.mxu0 0.0
        %336 = vmatprep.subr.mxu0 0.0
        %337 = vmatpush1.msra.mxu0 0.0
        %338 = vmatprep.subr.mxu0 0.0
        %339 = vmatpush1.msra.mxu0 0.0
        %340 = vmatprep.subr.mxu0 0.0
        %341 = vmatpush1.msra.mxu0 0.0
        %342 = vmatprep.subr.mxu0 0.0
        %343 = vmatpush1.msra.mxu0 0.0
        %344 = vmatprep.mubr.f32.mxu0 0.0
        %345 = vmatmul.mubr.f32.gmra.mrb[0].mxu0 %v230
        %v346 = vpop.f32.mrb[0].mxu0
        %v347 = vadd.f32 %v273, %v346
        %v348 = vpop.f32.mrb[0].mxu0
        %v349 = vadd.f32 %v277, %v348
        %350 = vmatprep.mubr.f32.mxu0 0.0
        %351 = vmatmul.mubr.f32.gmra.mrb[0].mxu0 %v231
        %v352 = vpop.f32.mrb[0].mxu0
        %v353 = vadd.f32 %v273, %v352
        %v354 = vpop.f32.mrb[0].mxu0
        %v355 = vadd.f32 %v277, %v354
        %356 = vdwg.mxu0
        %v357 = vmul.f32 %v347, 0.5
        %v358 = vmul.f32 %v349, 0.5
        %v359 = vmul.f32 %v353, 0.5
        %v360 = vmul.f32 %v355, 0.5
        %v361 = vmul.f32 %v347, 0.70710677
        %v362 = vmul.f32 %v349, 0.70710677
        %v363 = vmul.f32 %v353, 0.70710677
        %v364 = vmul.f32 %v355, 0.70710677
        %v365 = verf.f32.pop %v361
        %v366 = verf.f32.pop %v362
        %v367 = verf.f32.pop %v363
        %v368 = verf.f32.pop %v364
        %v369 = vadd.f32 %v365, 1.0
        %v370 = vadd.f32 %v366, 1.0
        %v371 = vadd.f32 %v367, 1.0
        %v372 = vadd.f32 %v368, 1.0
        %v373 = vmul.f32 %v357, %v369
        %v374 = vmul.f32 %v358, %v370
        %v375 = vmul.f32 %v359, %v371
        %v376 = vmul.f32 %v360, %v372
        %377 = vst [vmem:[%s225] sm:$0xff] %v373
        %378 = vst [vmem:[%s225 + $0x8] sm:$0xff] %v374
        %379 = vst [vmem:[%s225 + $0x10] sm:$0xff] %v375
        %380 = vst [vmem:[%s225 + $0x18] sm:$0xff] %v376
        %s381 = sand.u32 %s116, 1
        %s382 = scalar_lea.sflag [#allocation4], %s381
        %s383 = sand.u32 %s116, 1
        %s384 = smul.addr %s383, 32
        %s385 = scalar_lea.vmem [#allocation7], %s384
        // Predicated region
        $region41: #{tpu_custom_call.1} parent=31 // pred_check
          %p386 = pneg %p126
        $region42: #{tpu_custom_call.1} parent=31 // pred_check_branch
          %388 = sbr.rel (%p386) target = $region44
        $region43: #{tpu_custom_call.1} parent=31 // pred_region
          %s389 = smul.u32 2, %s25
          %s390 = smul.u32 2, %s26
          %s392 = ssub.s32 512, 512
          %393 = vsyncadd %s382, %s392
          %s394 = smul.addr %s389, 4
          %s395 = sadd.s32 %s390, %s394
          %s396 = smul.addr %s395, 128
          %s397 = scalar_lea.hbm %s3, %s396
          %s398 = sshll.u32 %s385, 4
          %s399 = int_to_ptr.vmem [resolvable:$true] %s398
          %404 = dma.vmem_to_hbm [thread:$0]  %s399, 512, %s397, %s382, 256, 512, 16
        $region44: #{tpu_custom_call.1} parent=31 // pred_fallthru
          _
      $region32: #{tpu_custom_call.1} parent=5 // pred_fallthru
        _
      %p405 = scmp.le.s32.totalorder 2, %s16
      // Predicated region
      $region45: #{tpu_custom_call.1} parent=5 // pred_check
        %p406 = pneg %p405
      $region46: #{tpu_custom_call.1} parent=5 // pred_check_branch
        %408 = sbr.rel (%p406) target = $region48
      $region47: #{tpu_custom_call.1} parent=5 // pred_region
        %s409 = ssub.s32 %s16, 2
        // Predicated region
        $region49: #{tpu_custom_call.1} parent=47 // pred_check
          %p410 = pneg %p132
        $region50: #{tpu_custom_call.1} parent=47 // pred_check_branch
          %412 = sbr.rel (%p410) target = $region52
        $region51: #{tpu_custom_call.1} parent=47 // pred_region
          %s413 = sand.u32 %s117, 1
          %s414 = scalar_lea.sflag [#allocation4], %s413
          %s415 = sand.u32 %s117, 1
          %s416 = smul.addr %s415, 32
          %s417 = scalar_lea.vmem [#allocation7], %s416
          %418 = dma.done %s414, 512
        $region52: #{tpu_custom_call.1} parent=47 // pred_fallthru
          _
      $region48: #{tpu_custom_call.1} parent=5 // pred_fallthru
        _
    $region6: #{tpu_custom_call.1} parent=1 // loop_footer
      %s20 = sadd.s32 1, %s16
    $region7: #{tpu_custom_call.1} parent=1 // loop_footer_branch
      %15 = sbr.rel target = $region3
    $region8: #{tpu_custom_call.1} parent=1 // loop_exit
      _
    %419 = vsyncpa [#allocation3], 1
    %s420 = scalar_lea.sflag [#allocation3], 1
    %421 = vsyncpa %s420, 1
    %422 = vsyncpa [#allocation6], 1
    %s423 = scalar_lea.sflag [#allocation6], 1
    %424 = vsyncpa %s423, 1
    %425 = vsyncpa [#allocation4], 1
    %s426 = scalar_lea.sflag [#allocation4], 1
    %427 = vsyncpa %s426, 1

</llo_original>
